<compile_context>
chip_gen: v6e
topology: v6e:2x2x1
jax: 0.10.0
libtpu: 0.0.40
codegen_flags: <defaults>
</compile_context>

<pallas_src>
import functools
import math

import jax
import jax.numpy as jnp
from jax.experimental import pallas as pl
from jax.experimental.pallas import tpu as pltpu

CLIPMIN = 1e-5


def _fake_quant_wt(wt, group_size, n_bits):
    """Grouped asymmetric min/max fake quantization of a K-major (tk, tn)
    float32 weight tile.  Each group is a contiguous block of `group_size`
    rows (sublanes), so the reduce keeps all 128 lanes busy."""
    qmax = float(2 ** n_bits - 1)
    tk, tn = wt.shape
    w3 = wt.reshape(tk // group_size, group_size, tn)
    wmin = jnp.min(w3, axis=1, keepdims=True)
    wmax = jnp.max(w3, axis=1, keepdims=True)
    scale = jnp.clip((wmax - wmin) / qmax, CLIPMIN, 1e4)
    # True division (not reciprocal-multiply): parity with the reference
    # `round(x / scale)` at rounding ties.
    zp = jnp.round(jnp.clip(-wmin / scale, -1e4, 1e4))
    q = jnp.clip(jnp.round(w3 / scale) + zp, 0.0, qmax)
    return ((q - zp) * scale).reshape(tk, tn)


def _qlinear_nocache_kernel(x_ref, w_ref, b_ref, o_ref, acc_ref, *,
                            group_size, n_bits, compute_dtype):
    """Single-M-tile (decode) kernel.  grid = (j, k); no dequant cache."""
    k = pl.program_id(1)
    nk = pl.num_programs(1)

    @pl.when(k == 0)
    def _init():
        acc_ref[...] = jnp.zeros_like(acc_ref)

    w_dq = _fake_quant_wt(w_ref[...].astype(jnp.float32), group_size, n_bits)
    acc_ref[...] += jnp.dot(x_ref[...].astype(compute_dtype),
                            w_dq.astype(compute_dtype),
                            preferred_element_type=jnp.float32)

    @pl.when(k == nk - 1)
    def _finalize():
        o_ref[...] = (acc_ref[...] + b_ref[...]).astype(o_ref.dtype)


def _qlinear_cached_kernel(x_ref, w_ref, b_ref, o_ref, acc_ref, wdq_ref, *,
                           group_size, n_bits, compute_dtype):
    """Multi-M-tile kernel.  grid = (j, i, k).  The raw weight tile is DMA'd
    and fake-quantized only during the i == 0 pass (its BlockSpec index map
    is pinned for i > 0, so no redundant weight DMA on later M tiles); all M
    tiles reuse the cached dequantized panel."""
    i = pl.program_id(1)
    k = pl.program_id(2)
    nk = pl.num_programs(2)

    @pl.when(i == 0)
    def _dequant():
        w_dq = _fake_quant_wt(w_ref[...].astype(jnp.float32), group_size, n_bits)
        wdq_ref[k] = w_dq.astype(compute_dtype)

    @pl.when(k == 0)
    def _init():
        acc_ref[...] = jnp.zeros_like(acc_ref)

    acc_ref[...] += jnp.dot(x_ref[...].astype(compute_dtype), wdq_ref[k],
                            preferred_element_type=jnp.float32)

    @pl.when(k == nk - 1)
    def _finalize():
        o_ref[...] = (acc_ref[...] + b_ref[...]).astype(o_ref.dtype)


def _pick_tile(dim, align, cap):
    """Largest multiple of `align` that divides `dim` and is <= cap, else the
    full (untiled) extent."""
    if dim % align != 0:
        return dim
    t = min(cap - cap % align, dim)
    while t >= align:
        if dim % t == 0:
            return t
        t -= align
    return dim


def _pick_tiles(M, N, K, group_size):
    tm = _pick_tile(M, 8, 256)
    tn = _pick_tile(N, 128, 256)
    # Give the megacore-parallel N axis >= 2 tiles when the output stays
    # lane-dense (>= 128 wide); matters on multi-TensorCore chips (v7x).
    if N // tn == 1 and tn % 256 == 0:
        tn //= 2
    # K tile: group- and lane-aligned, capped so per-step buffers stay small
    # even for odd transformer K values (K=11008, 13824, ...).
    align_k = group_size * 128 // math.gcd(group_size, 128)
    tk = _pick_tile(K, align_k, 1024)
    return tm, tn, tk


def _vmem_limit(tm, tn, tk, nk, nm, x_bytes, w_bytes, c_bytes, o_bytes):
    need = (2 * tm * tk * x_bytes        # x double buffer
            + 2 * tk * tn * w_bytes      # raw-weight double buffer
            + 2 * tn * 4                 # bias double buffer
            + 2 * tm * tn * o_bytes      # output double buffer
            + tm * tn * 4)               # f32 accumulator scratch
    if nm > 1:
        need += nk * tk * tn * c_bytes   # dequantized-weight cache
    # Requirement + headroom; never the full physical VMEM (v7x: 64 MiB).
    return min(max(need + (16 << 20), 32 << 20), 56 << 20)


def quant_linear(x, weight, bias=None, *, group_size, n_bits,
                 tm=None, tn=None, tk=None,
                 compute_dtype=jnp.bfloat16,
                 weight_store_dtype=jnp.bfloat16,
                 out_dtype=None):
    """Fused fake-quant(weight) + F.linear.

    x: (..., K) activations; weight: (N, K) nn.Linear weight; bias: (N,) | None.
    `weight_store_dtype` is the dtype the weight is streamed from HBM in
    (bf16 halves the dominant HBM stream); `compute_dtype` is the MXU operand
    dtype (float32 for exact-parity validation).
    """
    assert 1 <= n_bits < 16  # TODO(synk): n_bits >= 16 passthrough not implemented
    *lead, K = x.shape
    N, K2 = weight.shape
    assert K == K2, "in_features mismatch"
    assert K % group_size == 0, "group size should divide in_features"
    out_dtype = x.dtype if out_dtype is None else out_dtype

    x2d = x.reshape(-1, K)
    M = x2d.shape[0]

    dm, dn, dk = _pick_tiles(M, N, K, group_size)
    tm = dm if tm is None else tm
    tn = dn if tn is None else tn
    tk = dk if tk is None else tk
    assert M % tm == 0 and N % tn == 0 and K % tk == 0
    assert tk % group_size == 0, "K tile must be group-aligned"
    nj, nm, nk = N // tn, M // tm, K // tk

    # Pack the weight once: storage dtype + K-major layout (groups land on
    # sublanes, matmul is canonical).  In deployment do this at load time.
    wt = weight.astype(weight_store_dtype).T                       # (K, N)

    # x is re-read nj times; stream it in the matmul dtype when that is
    # narrower and there is actual reuse.
    if compute_dtype == jnp.bfloat16 and x2d.dtype.itemsize > 2 and nj >= 2:
        x2d = x2d.astype(jnp.bfloat16)

    bias2d = (jnp.zeros((1, N), jnp.float32) if bias is None
              else bias.reshape(1, N).astype(jnp.float32))

    vmem_limit = _vmem_limit(tm, tn, tk, nk, nm,
                             x2d.dtype.itemsize,
                             jnp.dtype(weight_store_dtype).itemsize,
                             jnp.dtype(compute_dtype).itemsize,
                             jnp.dtype(out_dtype).itemsize)

    if nm == 1:
        # Decode / single M tile: no cache (zero reuse), dequant feeds the MXU
        # directly; each weight tile is DMA'd exactly once.
        kernel = functools.partial(_qlinear_nocache_kernel, group_size=group_size,
                                   n_bits=n_bits, compute_dtype=compute_dtype)
        f = pl.pallas_call(
            kernel,
            out_shape=jax.ShapeDtypeStruct((M, N), out_dtype),
            grid_spec=pltpu.PrefetchScalarGridSpec(
                num_scalar_prefetch=0,
                grid=(nj, nk),                                       # (j, k)
                in_specs=[
                    pl.BlockSpec((tm, tk), lambda j, k: (0, k)),     # x
                    pl.BlockSpec((tk, tn), lambda j, k: (k, j)),     # weight (K,N)
                    pl.BlockSpec((1, tn), lambda j, k: (0, j)),      # bias
                ],
                out_specs=pl.BlockSpec((tm, tn), lambda j, k: (0, j)),
                scratch_shapes=[pltpu.VMEM((tm, tn), jnp.float32)]),
            compiler_params=pltpu.CompilerParams(
                dimension_semantics=("parallel", "arbitrary"),
                vmem_limit_bytes=vmem_limit),
        )
    else:
        kernel = functools.partial(_qlinear_cached_kernel, group_size=group_size,
                                   n_bits=n_bits, compute_dtype=compute_dtype)

        def w_index(j, i, k):
            # i == 0: walk the K tiles (dequant pass).  i > 0: pin the block
            # index to the last tile fetched so the pipeline's runtime
            # index-compare elides the raw-weight DMA entirely (the
            # dequantized panel is already cached in VMEM).
            return (jnp.where(i == 0, k, nk - 1), j)

        f = pl.pallas_call(
            kernel,
            out_shape=jax.ShapeDtypeStruct((M, N), out_dtype),
            grid_spec=pltpu.PrefetchScalarGridSpec(
                num_scalar_prefetch=0,
                grid=(nj, nm, nk),                                   # (j, i, k)
                in_specs=[
                    pl.BlockSpec((tm, tk), lambda j, i, k: (i, k)),  # x
                    pl.BlockSpec((tk, tn), w_index),                 # weight (K,N)
                    pl.BlockSpec((1, tn), lambda j, i, k: (0, j)),   # bias
                ],
                out_specs=pl.BlockSpec((tm, tn), lambda j, i, k: (i, j)),
                scratch_shapes=[
                    pltpu.VMEM((tm, tn), jnp.float32),               # accumulator
                    pltpu.VMEM((nk, tk, tn), compute_dtype),         # dequant cache
                ]),
            compiler_params=pltpu.CompilerParams(
                dimension_semantics=("parallel", "arbitrary", "arbitrary"),
                vmem_limit_bytes=vmem_limit),
        )

    out = f(x2d, wt, bias2d)
    return out.reshape(*lead, N)


def _reference(x, weight, bias, group_size, n_bits):
    """Plain-JAX mirror of UniformAffineQuantizer + F.linear (verification)."""
    qmax = float(2 ** n_bits - 1)
    N, K = weight.shape
    w = weight.reshape(-1, group_size)
    wmin = jnp.min(w, axis=-1, keepdims=True)
    wmax = jnp.max(w, axis=-1, keepdims=True)
    scale = jnp.clip((wmax - wmin) / qmax, CLIPMIN, 1e4)
    zp = jnp.round(jnp.clip(-wmin / scale, -1e4, 1e4))
    q = jnp.clip(jnp.round(w / scale) + zp, 0.0, qmax)
    w_dq = ((q - zp) * scale).reshape(N, K)
    out = x @ w_dq.T
    return out if bias is None else out + bias[None, :]


if __name__ == "__main__":
    # Small deterministic shapes consistent with nn.Linear(in=256, out=256).
    M, K, N = 8, 256, 256
    GROUP_SIZE, N_BITS = 32, 4

    key = jax.random.PRNGKey(0)
    kx, kw, kb, kx2 = jax.random.split(key, 4)
    x = jax.random.normal(kx, (M, K), dtype=jnp.float32)
    weight = jax.random.normal(kw, (N, K), dtype=jnp.float32) * 0.1
    bias = jax.random.normal(kb, (N,), dtype=jnp.float32) * 0.01

    ref = _reference(x, weight, bias, GROUP_SIZE, N_BITS)

    # 1) Full-precision parity (f32 storage + f32 MXU), single-M-tile kernel,
    #    tk=128 so the K-accumulation loop runs (nk=2).
    out_f32 = quant_linear(x, weight, bias, group_size=GROUP_SIZE, n_bits=N_BITS,
                           tk=128, compute_dtype=jnp.float32,
                           weight_store_dtype=jnp.float32)
    out_f32 = jax.block_until_ready(out_f32)
    assert out_f32.shape == (M, N)
    assert jnp.allclose(out_f32, ref, atol=5e-3, rtol=5e-3), "f32 decode path mismatch"

    # 2) Default path: bf16-stored weight + bf16 MXU operands.  Compare against
    #    a reference that also sees the bf16-stored weight so the check isolates
    #    matmul rounding (the storage dtype is a deliberate, documented tradeoff).
    ref_bf16w = _reference(x, weight.astype(jnp.bfloat16).astype(jnp.float32),
                           bias, GROUP_SIZE, N_BITS)
    out_bf16 = quant_linear(x, weight, bias, group_size=GROUP_SIZE, n_bits=N_BITS,
                            tk=128)
    out_bf16 = jax.block_until_ready(out_bf16)
    assert out_bf16.shape == (M, N)
    assert jnp.allclose(out_bf16, ref_bf16w, atol=5e-2, rtol=5e-2), "bf16 path mismatch"

    # 3) Multi-M-tile (cached) kernel: force nm=2 with tm=16.
    M2 = 32
    x2 = jax.random.normal(kx2, (M2, K), dtype=jnp.float32)
    ref2 = _reference(x2, weight, bias, GROUP_SIZE, N_BITS)
    out2 = quant_linear(x2, weight, bias, group_size=GROUP_SIZE, n_bits=N_BITS,
                        tm=16, tk=128, compute_dtype=jnp.float32,
                        weight_store_dtype=jnp.float32)
    out2 = jax.block_until_ready(out2)
    assert out2.shape == (M2, N)
    assert jnp.allclose(out2, ref2, atol=5e-3, rtol=5e-3), "cached path mismatch"

    print("KERNEL_OK")
</pallas_src>

<mosaic_0001>
module attributes {stable_mosaic.version = 11 : i64} {
  func.func @_qlinear_nocache_kernel(%arg0: i32, %arg1: i32, %arg2: memref<8x128xf32, #tpu.memory_space<vmem>>, %arg3: memref<128x128xf32, #tpu.memory_space<vmem>>, %arg4: memref<1x128xf32, #tpu.memory_space<vmem>>, %arg5: memref<8x128xf32, #tpu.memory_space<vmem>>, %arg6: memref<8x128xf32, #tpu.memory_space<vmem>>) attributes {dimension_semantics = [#tpu.dimension_semantics<parallel>, #tpu.dimension_semantics<arbitrary>], iteration_bounds = array<i64: 2, 2>, scalar_prefetch = 0 : i64, scratch_operands = 1 : i64, tpu.core_type = #tpu.core_type<tc>, window_params = [{transform_indices = @transform_0, window_bounds = array<i64: 8, 128>}, {transform_indices = @transform_1, window_bounds = array<i64: 128, 128>}, {transform_indices = @transform_2, window_bounds = array<i64: 1, 128>}, {transform_indices = @transform_3, window_bounds = array<i64: 8, 128>}]} {
    %c0_i32 = arith.constant 0 : i32
    %0 = arith.cmpi eq, %arg1, %c0_i32 : i32
    %1 = arith.extui %0 : i1 to i32
    %c0_i32_0 = arith.constant 0 : i32
    %2 = arith.cmpi ne, %1, %c0_i32_0 : i32
    scf.if %2 {
      %cst_19 = arith.constant 0.000000e+00 : f32
      %46 = vector.broadcast %cst_19 : f32 to vector<8x128xf32>
      %c0_20 = arith.constant 0 : index
      %c0_21 = arith.constant 0 : index
      %47 = vector.load %arg6[%c0_20, %c0_21] : memref<8x128xf32, #tpu.memory_space<vmem>>, vector<8x128xf32>
      tpu.vector_store %arg6[%c0_20, %c0_21], %46 {strides = array<i32>} : memref<8x128xf32, #tpu.memory_space<vmem>>, vector<8x128xf32>,
    } else {
    }
    %c0 = arith.constant 0 : index
    %c0_1 = arith.constant 0 : index
    %3 = vector.load %arg3[%c0, %c0_1] : memref<128x128xf32, #tpu.memory_space<vmem>>, vector<128x128xf32>
    %4 = vector.shape_cast %3 : vector<128x128xf32> to vector<4x32x128xf32>
    %cst = arith.constant dense<0x7F800000> : vector<4x128xf32>
    %5 = vector.multi_reduction <minimumf>, %4, %cst [1] : vector<4x32x128xf32> to vector<4x128xf32>
    %6 = vector.shape_cast %5 : vector<4x128xf32> to vector<4x1x128xf32>
    %cst_2 = arith.constant dense<0xFF800000> : vector<4x128xf32>
    %7 = vector.multi_reduction <maximumf>, %4, %cst_2 [1] : vector<4x32x128xf32> to vector<4x128xf32>
    %8 = vector.shape_cast %7 : vector<4x128xf32> to vector<4x1x128xf32>
    %9 = arith.subf %8, %6 : vector<4x1x128xf32>
    %cst_3 = arith.constant 1.500000e+01 : f32
    %10 = vector.broadcast %cst_3 : f32 to vector<4x1x128xf32>
    %11 = arith.divf %9, %10 : vector<4x1x128xf32>
    %cst_4 = arith.constant 9.99999974E-6 : f32
    %cst_5 = arith.constant 1.000000e+04 : f32
    %12 = vector.broadcast %cst_4 : f32 to vector<4x1x128xf32>
    %13 = arith.maximumf %12, %11 : vector<4x1x128xf32>
    %14 = vector.broadcast %cst_5 : f32 to vector<4x1x128xf32>
    %15 = arith.minimumf %14, %13 : vector<4x1x128xf32>
    %cst_6 = arith.constant 0.000000e+00 : f32
    %16 = vector.broadcast %cst_6 : f32 to vector<4x1x128xf32>
    %17 = arith.subf %16, %6 : vector<4x1x128xf32>
    %18 = arith.divf %17, %15 : vector<4x1x128xf32>
    %cst_7 = arith.constant -1.000000e+04 : f32
    %cst_8 = arith.constant 1.000000e+04 : f32
    %19 = vector.broadcast %cst_7 : f32 to vector<4x1x128xf32>
    %20 = arith.maximumf %19, %18 : vector<4x1x128xf32>
    %21 = vector.broadcast %cst_8 : f32 to vector<4x1x128xf32>
    %22 = arith.minimumf %21, %20 : vector<4x1x128xf32>
    %23 = math.roundeven %22 : vector<4x1x128xf32>
    %24 = vector.broadcast %15 : vector<4x1x128xf32> to vector<4x32x128xf32>
    %25 = arith.divf %4, %24 : vector<4x32x128xf32>
    %26 = math.roundeven %25 : vector<4x32x128xf32>
    %27 = vector.broadcast %23 : vector<4x1x128xf32> to vector<4x32x128xf32>
    %28 = arith.addf %26, %27 : vector<4x32x128xf32>
    %cst_9 = arith.constant 0.000000e+00 : f32
    %cst_10 = arith.constant 1.500000e+01 : f32
    %29 = vector.broadcast %cst_9 : f32 to vector<4x32x128xf32>
    %30 = arith.maximumf %29, %28 : vector<4x32x128xf32>
    %31 = vector.broadcast %cst_10 : f32 to vector<4x32x128xf32>
    %32 = arith.minimumf %31, %30 : vector<4x32x128xf32>
    %33 = vector.broadcast %23 : vector<4x1x128xf32> to vector<4x32x128xf32>
    %34 = arith.subf %32, %33 : vector<4x32x128xf32>
    %35 = vector.broadcast %15 : vector<4x1x128xf32> to vector<4x32x128xf32>
    %36 = arith.mulf %34, %35 : vector<4x32x128xf32>
    %37 = vector.shape_cast %36 : vector<4x32x128xf32> to vector<128x128xf32>
    %c0_11 = arith.constant 0 : index
    %c0_12 = arith.constant 0 : index
    %38 = vector.load %arg6[%c0_11, %c0_12] : memref<8x128xf32, #tpu.memory_space<vmem>>, vector<8x128xf32>
    %c0_13 = arith.constant 0 : index
    %c0_14 = arith.constant 0 : index
    %39 = vector.load %arg2[%c0_13, %c0_14] : memref<8x128xf32, #tpu.memory_space<vmem>>, vector<8x128xf32>
    %cst_15 = arith.constant dense<0.000000e+00> : vector<8x128xf32>
    %40 = tpu.matmul %39, %37, %cst_15 {dimension_numbers = #tpu.dot_dimension_numbers<[1], [0], [0], [1], [0, 0, 1, 1], [], []>} : vector<8x128xf32>, vector<128x128xf32>, vector<8x128xf32> -> vector<8x128xf32>
    %41 = arith.addf %38, %40 : vector<8x128xf32>
    %c0_16 = arith.constant 0 : index
    %c0_17 = arith.constant 0 : index
    %42 = vector.load %arg6[%c0_16, %c0_17] : memref<8x128xf32, #tpu.memory_space<vmem>>, vector<8x128xf32>
    tpu.vector_store %arg6[%c0_16, %c0_17], %41 {strides = array<i32>} : memref<8x128xf32, #tpu.memory_space<vmem>>, vector<8x128xf32>,
    %c1_i32 = arith.constant 1 : i32
    %43 = arith.cmpi eq, %arg1, %c1_i32 : i32
    %44 = arith.extui %43 : i1 to i32
    %c0_i32_18 = arith.constant 0 : i32
    %45 = arith.cmpi ne, %44, %c0_i32_18 : i32
    scf.if %45 {
      %c0_19 = arith.constant 0 : index
      %c0_20 = arith.constant 0 : index
      %46 = vector.load %arg6[%c0_19, %c0_20] : memref<8x128xf32, #tpu.memory_space<vmem>>, vector<8x128xf32>
      %c0_21 = arith.constant 0 : index
      %c0_22 = arith.constant 0 : index
      %47 = vector.load %arg4[%c0_21, %c0_22] : memref<1x128xf32, #tpu.memory_space<vmem>>, vector<1x128xf32>
      %48 = vector.broadcast %47 : vector<1x128xf32> to vector<8x128xf32>
      %49 = arith.addf %46, %48 : vector<8x128xf32>
      %c0_23 = arith.constant 0 : index
      %c0_24 = arith.constant 0 : index
      %50 = vector.load %arg5[%c0_23, %c0_24] : memref<8x128xf32, #tpu.memory_space<vmem>>, vector<8x128xf32>
      tpu.vector_store %arg5[%c0_23, %c0_24], %49 {strides = array<i32>} : memref<8x128xf32, #tpu.memory_space<vmem>>, vector<8x128xf32>,
    } else {
    }
    return
  }
  func.func @transform_0(%arg0: i32, %arg1: i32) -> (i32, i32) {
    %c0_i32 = arith.constant 0 : i32
    %c0_i32_0 = arith.constant 0 : i32
    return %c0_i32, %arg1 : i32, i32
  }
  func.func @transform_1(%arg0: i32, %arg1: i32) -> (i32, i32) {
    %c0_i32 = arith.constant 0 : i32
    return %arg1, %arg0 : i32, i32
  }
  func.func @transform_2(%arg0: i32, %arg1: i32) -> (i32, i32) {
    %c0_i32 = arith.constant 0 : i32
    %c0_i32_0 = arith.constant 0 : i32
    return %c0_i32, %arg0 : i32, i32
  }
  func.func @transform_3(%arg0: i32, %arg1: i32) -> (i32, i32) {
    %c0_i32 = arith.constant 0 : i32
    %c0_i32_0 = arith.constant 0 : i32
    return %c0_i32, %arg0 : i32, i32
  }
}

</mosaic_0001>

<llo_original>
// kernel: tpu_custom_call.1
$region0: #{tpu_custom_call.1}
  #allocation0 [shape = 'u32[]', space=smem, size = 0x4, offset = 0x4, fixed_abs, tag = 'smem constant byte address 0x4 - core index']
  #allocation1 [shape = 'u32[144,128]{1,0:T(1,128)}', space=vmem, size = 0x12000, scoped, tag = 'internal scratch']
  #allocation2 [shape = 'f32[8,128]{1,0:T(8,128)}', space=vmem, size = 0x1000, scoped, tag = 'scratch operand']
  %s0 = inlined_call_operand.hbm [shape: f32[8,256], index: 0, kind: input, shape index: {}]
  %s1 = inlined_call_operand.hbm [shape: f32[256,256], index: 1, kind: input, shape index: {}]
  %s2 = inlined_call_operand.vmem [shape: f32[1,256], index: 2, kind: input, shape index: {}]
  %s3 = inlined_call_operand.hbm [shape: f32[8,256], index: 3, kind: output, shape index: {}]
  %s4 = sld [smem:[#allocation0]]
  $region61: #{tpu_custom_call.1} parent=0
    _
  %s6 = ssub.s32 1, %s4
  %s7 = scalar_select 0, %s6, %s4
  $region1: #{tpu_custom_call.1} parent=0
    #allocation3 [shape = 'u8[8192]{0}', space=vmem, size = 0x2000, scoped, tag = 'input window, operand 0']
    #allocation4 [shape = 's32[2]{0}', space=sflag, size = 0x8, scoped, tag = 'scoped memory for tpu_custom_call.1']
    #allocation5 [shape = 's32[2]{0}', space=sflag, size = 0x8, scoped, tag = 'scoped memory for tpu_custom_call.1']
    #allocation6 [shape = 'u8[131072]{0}', space=vmem, size = 0x20000, scoped, tag = 'input window, operand 1']
    #allocation7 [shape = 's32[2]{0}', space=sflag, size = 0x8, scoped, tag = 'scoped memory for tpu_custom_call.1']
    #allocation8 [shape = 'u8[8192]{0}', space=vmem, size = 0x2000, scoped, tag = 'output window, operand 0']
    %8 = vsyncpa [#allocation4], 0
    %s9 = scalar_lea.sflag [#allocation4], 1
    %10 = vsyncpa %s9, 0
    %11 = vsyncpa [#allocation7], 0
    %s12 = scalar_lea.sflag [#allocation7], 1
    %13 = vsyncpa %s12, 0
    %14 = vsyncpa [#allocation5], 0
    %s15 = scalar_lea.sflag [#allocation5], 1
    %16 = vsyncpa %s15, 0
    loop: start=0, step=1, limit=6
    $region2: #{tpu_custom_call.1} parent=1 // loop_pre_header
      _
    $region3: #{tpu_custom_call.1} parent=1 // loop_header
      %s18 = sphi 0, %s22
      %p19 = scmp.ge.s32.totalorder %s18, 6
      %s25 = sphi 0, %s37
      %s26 = sphi 0, %s33
      %s27 = sphi 0, %s25
      %s28 = sphi 0, %s26
      %s29 = sphi 0, %s27
      %s30 = sphi 0, %s28
      %s40 = sphi 0, %s42
      %s43 = sphi 0, %s40
      %s44 = sphi 0, %s43
      %s60 = sphi 0, %s44
      %s68 = sphi 0, %s70
      %s71 = sphi 0, %s68
      %s72 = sphi 0, %s71
      %s88 = sphi 0, %s72
      %s94 = sphi 0, %s96
      %s97 = sphi 0, %s94
      %s98 = sphi 0, %s97
      %s114 = sphi 0, %s98
      %s120 = sphi 0, %s122
      %s123 = sphi 0, %s120
      %s124 = sphi 0, %s123
      %s140 = sphi 0, %s124
    $region4: #{tpu_custom_call.1} parent=1 // loop_header_branch
      %21 = sbr.rel (%p19) target = $region8
    $region5: #{tpu_custom_call.1} parent=1 // loop_body
      %s23 = ssub.s32 %s18, 1
      %s24 = ssub.s32 %s18, 2
      %s31 = sadd.s32 1, %s26
      %p32 = scmp.ge.s32.totalorder %s31, 2
      %s33 = scalar_select %p32, 0, %s31
      %s34 = sadd.s32 1, %s25
      %s35 = scalar_select %p32, %s34, %s25
      %p36 = scmp.ge.s32.totalorder %s35, 2
      %s37 = scalar_select %p36, 0, %s35
      %s38 = ssub.s32 %s26, %s33
      %p39 = scmp.eq.s32.totalorder %s38, 0
      %s41 = sadd.s32 %s40, 1
      %s42 = scalar_select %p39, %s40, %s41
      %p45 = pneg %p39
      %p46 = scmp.eq.s32.totalorder %s18, 3
      %p47 = por %p45, %p46
      %p48 = scmp.ne.s32.totalorder %s40, %s43
      %p49 = scmp.eq.s32.totalorder %s18, 0
      %p50 = por %p48, %p49
      %p51 = scmp.ne.s32.totalorder %s40, %s43
      %p52 = scmp.eq.s32.totalorder %s23, 3
      %p53 = por %p51, %p52
      %p54 = scmp.ne.s32.totalorder %s43, %s44
      %p55 = scmp.eq.s32.totalorder %s23, 0
      %p56 = por %p54, %p55
      %p57 = scmp.ne.s32.totalorder %s43, %s44
      %p58 = scmp.eq.s32.totalorder %s24, 3
      %p59 = por %p57, %p58
      %p61 = scmp.ne.s32.totalorder %s44, %s60
      %p62 = scmp.eq.s32.totalorder %s24, 0
      %p63 = por %p61, %p62
      %s64 = ssub.s32 %s26, %s33
      %s65 = ssub.s32 %s25, %s37
      %s66 = sor.u32 %s64, %s65
      %p67 = scmp.eq.s32.totalorder %s66, 0
      %s69 = sadd.s32 %s68, 1
      %s70 = scalar_select %p67, %s68, %s69
      %p73 = pneg %p67
      %p74 = scmp.eq.s32.totalorder %s18, 3
      %p75 = por %p73, %p74
      %p76 = scmp.ne.s32.totalorder %s68, %s71
      %p77 = scmp.eq.s32.totalorder %s18, 0
      %p78 = por %p76, %p77
      %p79 = scmp.ne.s32.totalorder %s68, %s71
      %p80 = scmp.eq.s32.totalorder %s23, 3
      %p81 = por %p79, %p80
      %p82 = scmp.ne.s32.totalorder %s71, %s72
      %p83 = scmp.eq.s32.totalorder %s23, 0
      %p84 = por %p82, %p83
      %p85 = scmp.ne.s32.totalorder %s71, %s72
      %p86 = scmp.eq.s32.totalorder %s24, 3
      %p87 = por %p85, %p86
      %p89 = scmp.ne.s32.totalorder %s72, %s88
      %p90 = scmp.eq.s32.totalorder %s24, 0
      %p91 = por %p89, %p90
      %s92 = ssub.s32 %s25, %s37
      %p93 = scmp.eq.s32.totalorder %s92, 0
      %s95 = sadd.s32 %s94, 1
      %s96 = scalar_select %p93, %s94, %s95
      %p99 = pneg %p93
      %p100 = scmp.eq.s32.totalorder %s18, 3
      %p101 = por %p99, %p100
      %p102 = scmp.ne.s32.totalorder %s94, %s97
      %p103 = scmp.eq.s32.totalorder %s18, 0
      %p104 = por %p102, %p103
      %p105 = scmp.ne.s32.totalorder %s94, %s97
      %p106 = scmp.eq.s32.totalorder %s23, 3
      %p107 = por %p105, %p106
      %p108 = scmp.ne.s32.totalorder %s97, %s98
      %p109 = scmp.eq.s32.totalorder %s23, 0
      %p110 = por %p108, %p109
      %p111 = scmp.ne.s32.totalorder %s97, %s98
      %p112 = scmp.eq.s32.totalorder %s24, 3
      %p113 = por %p111, %p112
      %p115 = scmp.ne.s32.totalorder %s98, %s114
      %p116 = scmp.eq.s32.totalorder %s24, 0
      %p117 = por %p115, %p116
      %s118 = ssub.s32 %s25, %s37
      %p119 = scmp.eq.s32.totalorder %s118, 0
      %s121 = sadd.s32 %s120, 1
      %s122 = scalar_select %p119, %s120, %s121
      %p125 = pneg %p119
      %p126 = scmp.eq.s32.totalorder %s18, 3
      %p127 = por %p125, %p126
      %p128 = scmp.ne.s32.totalorder %s120, %s123
      %p129 = scmp.eq.s32.totalorder %s18, 0
      %p130 = por %p128, %p129
      %p131 = scmp.ne.s32.totalorder %s120, %s123
      %p132 = scmp.eq.s32.totalorder %s23, 3
      %p133 = por %p131, %p132
      %p134 = scmp.ne.s32.totalorder %s123, %s124
      %p135 = scmp.eq.s32.totalorder %s23, 0
      %p136 = por %p134, %p135
      %p137 = scmp.ne.s32.totalorder %s123, %s124
      %p138 = scmp.eq.s32.totalorder %s24, 3
      %p139 = por %p137, %p138
      %p141 = scmp.ne.s32.totalorder %s124, %s140
      %p142 = scmp.eq.s32.totalorder %s24, 0
      %p143 = por %p141, %p142
      %p144 = scmp.le.s32.totalorder 1, %s18
      %p145 = scmp.lt.s32.totalorder %s18, 5
      %p146 = pnand %p144, %p145
      %p147 = pneg %p146
      // Predicated region
      $region9: #{tpu_custom_call.1} parent=5 // pred_check
        _
      $region10: #{tpu_custom_call.1} parent=5 // pred_check_branch
        %149 = sbr.rel (%p146) target = $region12
      $region11: #{tpu_custom_call.1} parent=5 // pred_region
        %s150 = ssub.s32 %s18, 1
      $region12: #{tpu_custom_call.1} parent=5 // pred_fallthru
        _
      %p151 = scmp.lt.s32.totalorder %s18, 4
      // Predicated region
      $region13: #{tpu_custom_call.1} parent=5 // pred_check
        %p152 = pneg %p151
      $region14: #{tpu_custom_call.1} parent=5 // pred_check_branch
        %154 = sbr.rel (%p152) target = $region16
      $region15: #{tpu_custom_call.1} parent=5 // pred_region
        // Predicated region
        $region17: #{tpu_custom_call.1} parent=15 // pred_check
          %p155 = pneg %p50
        $region18: #{tpu_custom_call.1} parent=15 // pred_check_branch
          %157 = sbr.rel (%p155) target = $region20
        $region19: #{tpu_custom_call.1} parent=15 // pred_region
          %s158 = sand.u32 %s40, 1
          %s159 = scalar_lea.sflag [#allocation4], %s158
          %s160 = sand.u32 %s40, 1
          %s161 = smul.addr %s160, 8
          %s162 = scalar_lea.vmem [#allocation3], %s161
          %s164 = ssub.s32 128, 128
          %165 = vsyncadd %s159, %s164
          %s166 = smul.addr %s26, 128
          %s167 = scalar_lea.hbm %s0, %s166
          %s169 = sshll.u32 %s162, 4
          %s170 = int_to_ptr.vmem [resolvable:$true] %s169
          %172 = dma.hbm_to_vmem [thread:$0]  %s167, 128, %s170, %s159
        $region20: #{tpu_custom_call.1} parent=15 // pred_fallthru
          _
        // Predicated region
        $region21: #{tpu_custom_call.1} parent=15 // pred_check
          %p173 = pneg %p78
        $region22: #{tpu_custom_call.1} parent=15 // pred_check_branch
          %175 = sbr.rel (%p173) target = $region24
        $region23: #{tpu_custom_call.1} parent=15 // pred_region
          %s176 = sand.u32 %s68, 1
          %s177 = scalar_lea.sflag [#allocation7], %s176
          %s178 = sand.u32 %s68, 1
          %s179 = smul.addr %s178, 128
          %s180 = scalar_lea.vmem [#allocation6], %s179
          %s181 = smul.u32 16, %s26
          %s183 = ssub.s32 2048, 2048
          %184 = vsyncadd %s177, %s183
          %s185 = smul.addr %s181, 2
          %s186 = sadd.s32 %s25, %s185
          %s187 = smul.addr %s186, 128
          %s188 = scalar_lea.hbm %s1, %s187
          %s189 = sshll.u32 %s180, 4
          %s190 = int_to_ptr.vmem [resolvable:$true] %s189
          %195 = dma.hbm_to_vmem [thread:$0]  %s188, 2048, %s190, %s177, 256, 128, 8
        $region24: #{tpu_custom_call.1} parent=15 // pred_fallthru
          _
        // Predicated region
        $region25: #{tpu_custom_call.1} parent=15 // pred_check
          %p196 = pneg %p104
        $region26: #{tpu_custom_call.1} parent=15 // pred_check_branch
          %198 = sbr.rel (%p196) target = $region28
        $region27: #{tpu_custom_call.1} parent=15 // pred_region
          %p199 = scmp.lt.s32.totalorder %s25, 1
          %s200 = scalar_select %p199, %s25, 1
          %s201 = scalar_lea.vmem %s2, %s200
        $region28: #{tpu_custom_call.1} parent=15 // pred_fallthru
          _
      $region16: #{tpu_custom_call.1} parent=5 // pred_fallthru
        _
      %p202 = scmp.le.s32.totalorder 1, %s18
      %p203 = scmp.lt.s32.totalorder %s18, 5
      %p204 = pnand %p202, %p203
      %p205 = pneg %p204
      // Predicated region
      $region29: #{tpu_custom_call.1} parent=5 // pred_check
        _
      $region30: #{tpu_custom_call.1} parent=5 // pred_check_branch
        %207 = sbr.rel (%p204) target = $region32
      $region31: #{tpu_custom_call.1} parent=5 // pred_region
        %s208 = ssub.s32 %s18, 1
        %s209 = sand.u32 %s43, 1
        %s210 = scalar_lea.sflag [#allocation4], %s209
        %s211 = sand.u32 %s43, 1
        %s212 = smul.addr %s211, 8
        %s213 = scalar_lea.vmem [#allocation3], %s212
        // Predicated region
        $region33: #{tpu_custom_call.1} parent=31 // pred_check
          %p214 = pneg %p56
        $region34: #{tpu_custom_call.1} parent=31 // pred_check_branch
          %216 = sbr.rel (%p214) target = $region36
        $region35: #{tpu_custom_call.1} parent=31 // pred_region
          %217 = dma.done %s210, 128
        $region36: #{tpu_custom_call.1} parent=31 // pred_fallthru
          _
        %s218 = sand.u32 %s71, 1
        %s219 = scalar_lea.sflag [#allocation7], %s218
        %s220 = sand.u32 %s71, 1
        %s221 = smul.addr %s220, 128
        %s222 = scalar_lea.vmem [#allocation6], %s221
        // Predicated region
        $region37: #{tpu_custom_call.1} parent=31 // pred_check
          %p223 = pneg %p84
        $region38: #{tpu_custom_call.1} parent=31 // pred_check_branch
          %225 = sbr.rel (%p223) target = $region40
        $region39: #{tpu_custom_call.1} parent=31 // pred_region
          %226 = dma.done %s219, 2048
        $region40: #{tpu_custom_call.1} parent=31 // pred_fallthru
          _
        %s227 = sand.u32 %s43, 1
        %s228 = scalar_lea.sflag [#allocation4], %s227
        %s229 = sand.u32 %s43, 1
        %s230 = smul.addr %s229, 8
        %s231 = scalar_lea.vmem [#allocation3], %s230
        %p232 = pneg %p56
        %p233 = pneg %p53
        %s234 = sand.u32 %s71, 1
        %s235 = scalar_lea.sflag [#allocation7], %s234
        %s236 = sand.u32 %s71, 1
        %s237 = smul.addr %s236, 128
        %s238 = scalar_lea.vmem [#allocation6], %s237
        %p239 = pneg %p84
        %p240 = pneg %p81
        %p241 = scmp.lt.s32.totalorder %s27, 1
        %s242 = scalar_select %p241, %s27, 1
        %s243 = scalar_lea.vmem %s2, %s242
        %p244 = pneg %p110
        %p245 = pneg %p107
        %p246 = pneg %p136
        %p247 = pneg %p133
        %s248 = sand.u32 %s123, 1
        %s249 = scalar_lea.sflag [#allocation5], %s248
        %s250 = sand.u32 %s123, 1
        %s251 = smul.addr %s250, 8
        %s252 = scalar_lea.vmem [#allocation8], %s251
        %s253 = smul.u32 16, %s28
        %p254 = scmp.lt.s32.totalorder %s27, 1
        %s255 = scalar_select %p254, %s27, 1
        %s256 = scalar_lea.vmem %s2, %s255
        %p257 = scmp.eq.s32.totalorder %s28, 0
        // Predicated region
        $region41: #{tpu_custom_call.1} parent=31 // pred_check
          %p258 = pneg %p257
        $region42: #{tpu_custom_call.1} parent=31 // pred_check_branch
          %260 = sbr.rel (%p258) target = $region44
        $region43: #{tpu_custom_call.1} parent=31 // pred_region
          %261 = vst [vmem:[#allocation2] sm:$0xff] 0.0
        $region44: #{tpu_custom_call.1} parent=31 // pred_fallthru
          _
        %v262 = vld [vmem:[%s222] sm:$0xff]
        %v263 = vld [vmem:[%s222 + $0x8] sm:$0xff]
        %v264 = vld [vmem:[%s222 + $0x10] sm:$0xff]
        %v265 = vld [vmem:[%s222 + $0x18] sm:$0xff]
        %v266 = vld [vmem:[%s222 + $0x20] sm:$0xff]
        %v267 = vld [vmem:[%s222 + $0x28] sm:$0xff]
        %v268 = vld [vmem:[%s222 + $0x30] sm:$0xff]
        %v269 = vld [vmem:[%s222 + $0x38] sm:$0xff]
        %v270 = vld [vmem:[%s222 + $0x40] sm:$0xff]
        %v271 = vld [vmem:[%s222 + $0x48] sm:$0xff]
        %v272 = vld [vmem:[%s222 + $0x50] sm:$0xff]
        %v273 = vld [vmem:[%s222 + $0x58] sm:$0xff]
        %v274 = vld [vmem:[%s222 + $0x60] sm:$0xff]
        %v275 = vld [vmem:[%s222 + $0x68] sm:$0xff]
        %v276 = vld [vmem:[%s222 + $0x70] sm:$0xff]
        %v277 = vld [vmem:[%s222 + $0x78] sm:$0xff]
        %v278 = vmin.f32 %v262, %v263
        %v279 = vmin.f32 %v278, %v264
        %v280 = vmin.f32 %v279, %v265
        %v281 = vrot.slane %v280, 4
        %v282 = vmin.f32 %v280, %v281
        %v283 = vrot.slane %v282, 2
        %v284 = vmin.f32 %v282, %v283
        %v285 = vrot.slane %v284, 1
        %v286 = vmin.f32 %v284, %v285
        %v287 = vmin.f32 %v266, %v267
        %v288 = vmin.f32 %v287, %v268
        %v289 = vmin.f32 %v288, %v269
        %v290 = vrot.slane %v289, 4
        %v291 = vmin.f32 %v289, %v290
        %v292 = vrot.slane %v291, 2
        %v293 = vmin.f32 %v291, %v292
        %v294 = vrot.slane %v293, 1
        %v295 = vmin.f32 %v293, %v294
        %v296 = vmin.f32 %v270, %v271
        %v297 = vmin.f32 %v296, %v272
        %v298 = vmin.f32 %v297, %v273
        %v299 = vrot.slane %v298, 4
        %v300 = vmin.f32 %v298, %v299
        %v301 = vrot.slane %v300, 2
        %v302 = vmin.f32 %v300, %v301
        %v303 = vrot.slane %v302, 1
        %v304 = vmin.f32 %v302, %v303
        %v305 = vmin.f32 %v274, %v275
        %v306 = vmin.f32 %v305, %v276
        %v307 = vmin.f32 %v306, %v277
        %v308 = vrot.slane %v307, 4
        %v309 = vmin.f32 %v307, %v308
        %v310 = vrot.slane %v309, 2
        %v311 = vmin.f32 %v309, %v310
        %v312 = vrot.slane %v311, 1
        %v313 = vmin.f32 %v311, %v312
        %v314 = vmax.f32 %v262, %v263
        %v315 = vmax.f32 %v314, %v264
        %v316 = vmax.f32 %v315, %v265
        %v317 = vrot.slane %v316, 4
        %v318 = vmax.f32 %v316, %v317
        %v319 = vrot.slane %v318, 2
        %v320 = vmax.f32 %v318, %v319
        %v321 = vrot.slane %v320, 1
        %v322 = vmax.f32 %v320, %v321
        %v323 = vmax.f32 %v266, %v267
        %v324 = vmax.f32 %v323, %v268
        %v325 = vmax.f32 %v324, %v269
        %v326 = vrot.slane %v325, 4
        %v327 = vmax.f32 %v325, %v326
        %v328 = vrot.slane %v327, 2
        %v329 = vmax.f32 %v327, %v328
        %v330 = vrot.slane %v329, 1
        %v331 = vmax.f32 %v329, %v330
        %v332 = vmax.f32 %v270, %v271
        %v333 = vmax.f32 %v332, %v272
        %v334 = vmax.f32 %v333, %v273
        %v335 = vrot.slane %v334, 4
        %v336 = vmax.f32 %v334, %v335
        %v337 = vrot.slane %v336, 2
        %v338 = vmax.f32 %v336, %v337
        %v339 = vrot.slane %v338, 1
        %v340 = vmax.f32 %v338, %v339
        %v341 = vmax.f32 %v274, %v275
        %v342 = vmax.f32 %v341, %v276
        %v343 = vmax.f32 %v342, %v277
        %v344 = vrot.slane %v343, 4
        %v345 = vmax.f32 %v343, %v344
        %v346 = vrot.slane %v345, 2
        %v347 = vmax.f32 %v345, %v346
        %v348 = vrot.slane %v347, 1
        %v349 = vmax.f32 %v347, %v348
        %v350 = vsub.f32 %v322, %v286
        %v351 = vsub.f32 %v331, %v295
        %v352 = vsub.f32 %v340, %v304
        %v353 = vsub.f32 %v349, %v313
        %v354 = vrcp.pop 15.0
        %v355 = vmul.f32 %v350, %v354
        %v356 = vmul.f32 %v351, %v354
        %v357 = vmul.f32 %v352, %v354
        %v358 = vmul.f32 %v353, %v354
        %v359 = vmax.f32 %v355, 1e-05
        %v360 = vmax.f32 %v356, 1e-05
        %v361 = vmax.f32 %v357, 1e-05
        %v362 = vmax.f32 %v358, 1e-05
        %v363 = vmin.f32 %v359, 10000.0
        %v364 = vmin.f32 %v360, 10000.0
        %v365 = vmin.f32 %v361, 10000.0
        %v366 = vmin.f32 %v362, 10000.0
        %v367 = vsub.f32 0.0, %v286
        %v368 = vsub.f32 0.0, %v295
        %v369 = vsub.f32 0.0, %v304
        %v370 = vsub.f32 0.0, %v313
        %v371 = vrcp.pop %v363
        %v372 = vmul.f32 %v367, %v371
        %v373 = vrcp.pop %v364
        %v374 = vmul.f32 %v368, %v373
        %v375 = vrcp.pop %v365
        %v376 = vmul.f32 %v369, %v375
        %v377 = vrcp.pop %v366
        %v378 = vmul.f32 %v370, %v377
        %v379 = vmax.f32 %v372, -10000.0
        %v380 = vmax.f32 %v374, -10000.0
        %v381 = vmax.f32 %v376, -10000.0
        %v382 = vmax.f32 %v378, -10000.0
        %v383 = vmin.f32 %v379, 10000.0
        %v384 = vmin.f32 %v380, 10000.0
        %v385 = vmin.f32 %v381, 10000.0
        %v386 = vmin.f32 %v382, 10000.0
        %v387 = vround.ne.pseudo %v383
        %v388 = vround.ne.pseudo %v384
        %v389 = vround.ne.pseudo %v385
        %v390 = vround.ne.pseudo %v386
        %v391 = vmul.f32 %v262, %v371
        %v392 = vmul.f32 %v263, %v371
        %v393 = vmul.f32 %v264, %v371
        %v394 = vmul.f32 %v265, %v371
        %v395 = vmul.f32 %v266, %v373
        %v396 = vmul.f32 %v267, %v373
        %v397 = vmul.f32 %v268, %v373
        %v398 = vmul.f32 %v269, %v373
        %v399 = vmul.f32 %v270, %v375
        %v400 = vmul.f32 %v271, %v375
        %v401 = vmul.f32 %v272, %v375
        %v402 = vmul.f32 %v273, %v375
        %v403 = vmul.f32 %v274, %v377
        %v404 = vmul.f32 %v275, %v377
        %v405 = vmul.f32 %v276, %v377
        %v406 = vmul.f32 %v277, %v377
        %v407 = vround.ne.pseudo %v391
        %v408 = vround.ne.pseudo %v392
        %v409 = vround.ne.pseudo %v393
        %v410 = vround.ne.pseudo %v394
        %v411 = vround.ne.pseudo %v395
        %v412 = vround.ne.pseudo %v396
        %v413 = vround.ne.pseudo %v397
        %v414 = vround.ne.pseudo %v398
        %v415 = vround.ne.pseudo %v399
        %v416 = vround.ne.pseudo %v400
        %v417 = vround.ne.pseudo %v401
        %v418 = vround.ne.pseudo %v402
        %v419 = vround.ne.pseudo %v403
        %v420 = vround.ne.pseudo %v404
        %v421 = vround.ne.pseudo %v405
        %v422 = vround.ne.pseudo %v406
        %v423 = vadd.f32 %v407, %v387
        %v424 = vadd.f32 %v408, %v387
        %v425 = vadd.f32 %v409, %v387
        %v426 = vadd.f32 %v410, %v387
        %v427 = vadd.f32 %v411, %v388
        %v428 = vadd.f32 %v412, %v388
        %v429 = vadd.f32 %v413, %v388
        %v430 = vadd.f32 %v414, %v388
        %v431 = vadd.f32 %v415, %v389
        %v432 = vadd.f32 %v416, %v389
        %v433 = vadd.f32 %v417, %v389
        %v434 = vadd.f32 %v418, %v389
        %v435 = vadd.f32 %v419, %v390
        %v436 = vadd.f32 %v420, %v390
        %v437 = vadd.f32 %v421, %v390
        %v438 = vadd.f32 %v422, %v390
        %v439 = vmax.f32 %v423, 0.0
        %v440 = vmax.f32 %v424, 0.0
        %v441 = vmax.f32 %v425, 0.0
        %v442 = vmax.f32 %v426, 0.0
        %v443 = vmax.f32 %v427, 0.0
        %v444 = vmax.f32 %v428, 0.0
        %v445 = vmax.f32 %v429, 0.0
        %v446 = vmax.f32 %v430, 0.0
        %v447 = vmax.f32 %v431, 0.0
        %v448 = vmax.f32 %v432, 0.0
        %v449 = vmax.f32 %v433, 0.0
        %v450 = vmax.f32 %v434, 0.0
        %v451 = vmax.f32 %v435, 0.0
        %v452 = vmax.f32 %v436, 0.0
        %v453 = vmax.f32 %v437, 0.0
        %v454 = vmax.f32 %v438, 0.0
        %v455 = vmin.f32 %v439, 15.0
        %v456 = vmin.f32 %v440, 15.0
        %v457 = vmin.f32 %v441, 15.0
        %v458 = vmin.f32 %v442, 15.0
        %v459 = vmin.f32 %v443, 15.0
        %v460 = vmin.f32 %v444, 15.0
        %v461 = vmin.f32 %v445, 15.0
        %v462 = vmin.f32 %v446, 15.0
        %v463 = vmin.f32 %v447, 15.0
        %v464 = vmin.f32 %v448, 15.0
        %v465 = vmin.f32 %v449, 15.0
        %v466 = vmin.f32 %v450, 15.0
        %v467 = vmin.f32 %v451, 15.0
        %v468 = vmin.f32 %v452, 15.0
        %v469 = vmin.f32 %v453, 15.0
        %v470 = vmin.f32 %v454, 15.0
        %v471 = vsub.f32 %v455, %v387
        %v472 = vsub.f32 %v456, %v387
        %v473 = vsub.f32 %v457, %v387
        %v474 = vsub.f32 %v458, %v387
        %v475 = vsub.f32 %v459, %v388
        %v476 = vsub.f32 %v460, %v388
        %v477 = vsub.f32 %v461, %v388
        %v478 = vsub.f32 %v462, %v388
        %v479 = vsub.f32 %v463, %v389
        %v480 = vsub.f32 %v464, %v389
        %v481 = vsub.f32 %v465, %v389
        %v482 = vsub.f32 %v466, %v389
        %v483 = vsub.f32 %v467, %v390
        %v484 = vsub.f32 %v468, %v390
        %v485 = vsub.f32 %v469, %v390
        %v486 = vsub.f32 %v470, %v390
        %v487 = vmul.f32 %v471, %v363
        %v488 = vmul.f32 %v472, %v363
        %v489 = vmul.f32 %v473, %v363
        %v490 = vmul.f32 %v474, %v363
        %v491 = vmul.f32 %v475, %v364
        %v492 = vmul.f32 %v476, %v364
        %v493 = vmul.f32 %v477, %v364
        %v494 = vmul.f32 %v478, %v364
        %v495 = vmul.f32 %v479, %v365
        %v496 = vmul.f32 %v480, %v365
        %v497 = vmul.f32 %v481, %v365
        %v498 = vmul.f32 %v482, %v365
        %v499 = vmul.f32 %v483, %v366
        %v500 = vmul.f32 %v484, %v366
        %v501 = vmul.f32 %v485, %v366
        %v502 = vmul.f32 %v486, %v366
        %v503 = vld [vmem:[#allocation2] sm:$0xff]
        %v504 = vld [vmem:[%s213] sm:$0xff]
        %505 = vmatprep.subr.mxu0 0.0
        %506 = vmatpush1.msra.mxu0 %v502
        %507 = vmatprep.subr.mxu0 0.0
        %508 = vmatpush1.msra.mxu0 %v501
        %509 = vmatprep.subr.mxu0 0.0
        %510 = vmatpush1.msra.mxu0 %v500
        %511 = vmatprep.subr.mxu0 0.0
        %512 = vmatpush1.msra.mxu0 %v499
        %513 = vmatprep.subr.mxu0 0.0
        %514 = vmatpush1.msra.mxu0 %v498
        %515 = vmatprep.subr.mxu0 0.0
        %516 = vmatpush1.msra.mxu0 %v497
        %517 = vmatprep.subr.mxu0 0.0
        %518 = vmatpush1.msra.mxu0 %v496
        %519 = vmatprep.subr.mxu0 0.0
        %520 = vmatpush1.msra.mxu0 %v495
        %521 = vmatprep.subr.mxu0 0.0
        %522 = vmatpush1.msra.mxu0 %v494
        %523 = vmatprep.subr.mxu0 0.0
        %524 = vmatpush1.msra.mxu0 %v493
        %525 = vmatprep.subr.mxu0 0.0
        %526 = vmatpush1.msra.mxu0 %v492
        %527 = vmatprep.subr.mxu0 0.0
        %528 = vmatpush1.msra.mxu0 %v491
        %529 = vmatprep.subr.mxu0 0.0
        %530 = vmatpush1.msra.mxu0 %v490
        %531 = vmatprep.subr.mxu0 0.0
        %532 = vmatpush1.msra.mxu0 %v489
        %533 = vmatprep.subr.mxu0 0.0
        %534 = vmatpush1.msra.mxu0 %v488
        %535 = vmatprep.subr.mxu0 0.0
        %536 = vmatpush1.msra.mxu0 %v487
        %537 = vmatprep.subr.mxu0 0.0
        %538 = vmatpush2.msra.mxu0 0.0
        %539 = vmatprep.subr.mxu0 0.0
        %540 = vmatpush2.msra.mxu0 0.0
        %541 = vmatprep.subr.mxu0 0.0
        %542 = vmatpush2.msra.mxu0 0.0
        %543 = vmatprep.subr.mxu0 0.0
        %544 = vmatpush2.msra.mxu0 0.0
        %545 = vmatprep.subr.mxu0 0.0
        %546 = vmatpush2.msra.mxu0 0.0
        %547 = vmatprep.subr.mxu0 0.0
        %548 = vmatpush2.msra.mxu0 0.0
        %549 = vmatprep.subr.mxu0 0.0
        %550 = vmatpush2.msra.mxu0 0.0
        %551 = vmatprep.subr.mxu0 0.0
        %552 = vmatpush2.msra.mxu0 0.0
        %553 = vmatprep.subr.mxu0 0.0
        %554 = vmatpush2.msra.mxu0 0.0
        %555 = vmatprep.subr.mxu0 0.0
        %556 = vmatpush2.msra.mxu0 0.0
        %557 = vmatprep.subr.mxu0 0.0
        %558 = vmatpush2.msra.mxu0 0.0
        %559 = vmatprep.subr.mxu0 0.0
        %560 = vmatpush2.msra.mxu0 0.0
        %561 = vmatprep.subr.mxu0 0.0
        %562 = vmatpush2.msra.mxu0 0.0
        %563 = vmatprep.subr.mxu0 0.0
        %564 = vmatpush2.msra.mxu0 0.0
        %565 = vmatprep.subr.mxu0 0.0
        %566 = vmatpush2.msra.mxu0 0.0
        %567 = vmatprep.subr.mxu0 0.0
        %568 = vmatpush2.msra.mxu0 0.0
        %569 = vmatprep.mubr.f32.mxu0 0.0
        %570 = vmatmul.mubr.f32.gmra.mxu0 %v504
        %v571 = vpop.f32.mrf.mxu0
        %v572 = vadd.f32 0.0, %v571
        %v573 = vpop.f32.mrf.mxu0
        %574 = vdwg.mxu0
        %v575 = vadd.f32 %v503, %v572
        %576 = vst [vmem:[#allocation2] sm:$0xff] %v575
        %p577 = scmp.eq.s32.totalorder %s28, 1
        // Predicated region
        $region45: #{tpu_custom_call.1} parent=31 // pred_check
          %p578 = pneg %p577
        $region46: #{tpu_custom_call.1} parent=31 // pred_check_branch
          %580 = sbr.rel (%p578) target = $region48
        $region47: #{tpu_custom_call.1} parent=31 // pred_region
          %v581 = vld [vmem:[#allocation2] sm:$0xff]
          %v582 = vld [vmem:[%s256] sm:$0x1]
          %v584 = vlaneseq
          %v585 = vshrl.u32 %v584, 7
          %v586 = vsub.s32 0, %v585
          %v587 = vrot.slane %v582, %v586
          %v589 = vadd.f32 %v581, %v587
          %590 = vst [vmem:[%s252] sm:$0xff] %v589
        $region48: #{tpu_custom_call.1} parent=31 // pred_fallthru
          _
        %s591 = sand.u32 %s123, 1
        %s592 = scalar_lea.sflag [#allocation5], %s591
        %s593 = sand.u32 %s123, 1
        %s594 = smul.addr %s593, 8
        %s595 = scalar_lea.vmem [#allocation8], %s594
        // Predicated region
        $region49: #{tpu_custom_call.1} parent=31 // pred_check
          %p596 = pneg %p133
        $region50: #{tpu_custom_call.1} parent=31 // pred_check_branch
          %598 = sbr.rel (%p596) target = $region52
        $region51: #{tpu_custom_call.1} parent=31 // pred_region
          %s600 = ssub.s32 128, 128
          %601 = vsyncadd %s592, %s600
          %s602 = smul.addr %s27, 128
          %s603 = scalar_lea.hbm %s3, %s602
          %s605 = sshll.u32 %s595, 4
          %s606 = int_to_ptr.vmem [resolvable:$true] %s605
          %608 = dma.vmem_to_hbm [thread:$0]  %s606, 128, %s603, %s592
        $region52: #{tpu_custom_call.1} parent=31 // pred_fallthru
          _
      $region32: #{tpu_custom_call.1} parent=5 // pred_fallthru
        _
      %p609 = scmp.le.s32.totalorder 2, %s18
      // Predicated region
      $region53: #{tpu_custom_call.1} parent=5 // pred_check
        %p610 = pneg %p609
      $region54: #{tpu_custom_call.1} parent=5 // pred_check_branch
        %612 = sbr.rel (%p610) target = $region56
      $region55: #{tpu_custom_call.1} parent=5 // pred_region
        %s613 = ssub.s32 %s18, 2
        // Predicated region
        $region57: #{tpu_custom_call.1} parent=55 // pred_check
          %p614 = pneg %p139
        $region58: #{tpu_custom_call.1} parent=55 // pred_check_branch
          %616 = sbr.rel (%p614) target = $region60
        $region59: #{tpu_custom_call.1} parent=55 // pred_region
          %s617 = sand.u32 %s124, 1
          %s618 = scalar_lea.sflag [#allocation5], %s617
          %s619 = sand.u32 %s124, 1
          %s620 = smul.addr %s619, 8
          %s621 = scalar_lea.vmem [#allocation8], %s620
          %622 = dma.done %s618, 128
        $region60: #{tpu_custom_call.1} parent=55 // pred_fallthru
          _
      $region56: #{tpu_custom_call.1} parent=5 // pred_fallthru
        _
    $region6: #{tpu_custom_call.1} parent=1 // loop_footer
      %s22 = sadd.s32 1, %s18
    $region7: #{tpu_custom_call.1} parent=1 // loop_footer_branch
      %17 = sbr.rel target = $region3
    $region8: #{tpu_custom_call.1} parent=1 // loop_exit
      _
    %623 = vsyncpa [#allocation4], 1
    %s624 = scalar_lea.sflag [#allocation4], 1
    %625 = vsyncpa %s624, 1
    %626 = vsyncpa [#allocation7], 1
    %s627 = scalar_lea.sflag [#allocation7], 1
    %628 = vsyncpa %s627, 1
    %629 = vsyncpa [#allocation5], 1
    %s630 = scalar_lea.sflag [#allocation5], 1
    %631 = vsyncpa %s630, 1

</llo_original>
